<compile_context>
chip_gen: v6e
topology: v6e:2x2x1
jax: 0.10.0
libtpu: 0.0.40
codegen_flags: <defaults>
</compile_context>

<pallas_src>
import numpy as np
import jax
import jax.numpy as jnp
from jax import lax
from jax.experimental import pallas as pl
from jax.experimental.pallas import tpu as pltpu


# ----------------------------- Pallas kernel ------------------------------- #

def _fused_net_kernel(x_ref, w1_ref, b1_ref, w2_ref, b2_ref, wfc_ref, bfc_ref,
                      o_ref):
    # x_ref:  (Bt, 64)    bf16, flattened 8x8 input
    # w1_ref: (64, 1024)  bf16, dense conv1; cols = wit1*256 + win1*16 + cout
    # b1_ref: (1, 256)    f32,  conv1 bias tiled per pooled column (b1[col % 16])
    # w2_ref: (256, 512)  bf16, dense conv2; rows = win1*16 + cin,
    #                           cols = wit2*128 + win2*32 + cout
    # b2_ref: (1, 128)    f32,  conv2 bias tiled per pooled column (b2[col % 32])
    # wfc_ref:(128, 128)  bf16, fc weight, columns 81..127 zero
    # bfc_ref:(1, 128)    f32
    # o_ref:  (Bt, 128)   f32,  fc output padded to 128 lanes

    # conv1 (bf16 MXU, f32 acc) -> (Bt, 1024)
    y1 = jnp.dot(x_ref[...], w1_ref[...], preferred_element_type=jnp.float32)
    # maxpool 2x2: within-window index is the outermost factor of the 1024
    # lanes, so pooling is an elementwise max of four 256-wide lane slices.
    m1 = jnp.maximum(jnp.maximum(y1[:, 0:256], y1[:, 256:512]),
                     jnp.maximum(y1[:, 512:768], y1[:, 768:1024]))
    # bias + ReLU deferred past the pool (exact), then cast for the next MXU op.
    h1 = jnp.maximum(m1 + b1_ref[...], 0.0).astype(jnp.bfloat16)     # (Bt, 256)

    # conv2 -> (Bt, 512)
    y2 = jnp.dot(h1, w2_ref[...], preferred_element_type=jnp.float32)
    m2 = jnp.maximum(jnp.maximum(y2[:, 0:128], y2[:, 128:256]),
                     jnp.maximum(y2[:, 256:384], y2[:, 384:512]))
    h2 = jnp.maximum(m2 + b2_ref[...], 0.0).astype(jnp.bfloat16)     # (Bt, 128)

    # fc (128 -> 81, padded to 128 lanes), output kept in f32
    out = jnp.dot(h2, wfc_ref[...], preferred_element_type=jnp.float32)
    o_ref[...] = out + bfc_ref[...]


# ------------------ one-time host-side weight preparation ------------------ #

def prepare_dense_params(params):
    """Fold conv1/conv2/fc into dense, pool-friendly matmul weights.

    Pure numpy, runs once on the host; nothing here executes per forward call.
    """
    w1, b1, w2, b2, fw, fb = (np.asarray(p, np.float32) for p in params)

    # ---- conv1 as dense (64, 1024):
    #   rows = flat input pixel ih*8 + iw
    #   cols = wit1*256 + win1*16 + cout, win1 = (oh//2)*4 + ow//2 (pool window),
    #   wit1 = (oh%2)*2 + ow%2 (position inside the 2x2 pool window).
    w1d = np.zeros((64, 1024), np.float32)
    for oh in range(8):
        for ow in range(8):
            win1 = (oh // 2) * 4 + (ow // 2)
            wit1 = (oh % 2) * 2 + (ow % 2)
            for kh in range(3):
                for kw in range(3):
                    ih, iw = oh + kh - 1, ow + kw - 1
                    if 0 <= ih < 8 and 0 <= iw < 8:
                        c0 = wit1 * 256 + win1 * 16
                        w1d[ih * 8 + iw, c0:c0 + 16] = w1[:, 0, kh, kw]
    b1_256 = np.tile(b1, 16).reshape(1, 256)          # bias of pooled col = b1[col % 16]

    # ---- conv2 as dense (256, 512):
    #   rows = win1*16 + cin  (win1 == position h*4+w of the pooled 4x4 map)
    #   cols = wit2*128 + win2*32 + cout, win2 = (oh//2)*2 + ow//2, wit2 = (oh%2)*2 + ow%2
    w2d = np.zeros((256, 512), np.float32)
    for oh in range(4):
        for ow in range(4):
            win2 = (oh // 2) * 2 + (ow // 2)
            wit2 = (oh % 2) * 2 + (ow % 2)
            for kh in range(3):
                for kw in range(3):
                    h, w = oh + kh - 1, ow + kw - 1
                    if 0 <= h < 4 and 0 <= w < 4:
                        r0 = (h * 4 + w) * 16
                        c0 = wit2 * 128 + win2 * 32
                        w2d[r0:r0 + 16, c0:c0 + 32] = w2[:, :, kh, kw].T   # [cin, cout]
    b2_128 = np.tile(b2, 4).reshape(1, 128)           # bias of pooled col = b2[col % 32]

    # ---- fc: kernel row order is win2*32 + cout; torch NCHW flatten is cout*4 + win2.
    r = np.arange(128)
    torch_idx = (r % 32) * 4 + (r // 32)
    wfcd = np.zeros((128, 128), np.float32)
    wfcd[:, :81] = fw[:, torch_idx].T                 # (128, 81) in kernel row order
    bfcd = np.zeros((1, 128), np.float32)
    bfcd[0, :81] = fb

    bf16 = jnp.bfloat16
    return (jnp.asarray(w1d, bf16), jnp.asarray(b1_256, jnp.float32),
            jnp.asarray(w2d, bf16), jnp.asarray(b2_128, jnp.float32),
            jnp.asarray(wfcd, bf16), jnp.asarray(bfcd, jnp.float32))


# ------------------------------ forward wrapper ----------------------------- #

def _pick_bt(batch):
    """Batch tile: >=2 grid steps when the batch allows (pipelining + v7x's 2 TCs),
    full bf16 sublane tile (16) for tiny batches."""
    if batch >= 256:
        return 128
    if batch >= 128:
        return 64
    return min(128, max(16, ((batch + 15) // 16) * 16))


@jax.jit
def network_forward(x_nchw, dense_params):
    w1d, b1_256, w2d, b2_128, wfcd, bfcd = dense_params

    B = x_nchw.shape[0]
    bt = _pick_bt(B)
    bp = ((B + bt - 1) // bt) * bt                    # pad batch to a multiple of bt

    xf = x_nchw.reshape(B, 64).astype(jnp.bfloat16)
    if bp != B:
        xf = jnp.pad(xf, ((0, bp - B), (0, 0)))

    out = pl.pallas_call(
        _fused_net_kernel,
        out_shape=jax.ShapeDtypeStruct((bp, 128), jnp.float32),
        grid=(bp // bt,),
        in_specs=[
            pl.BlockSpec((bt, 64), lambda i: (i, 0)),
            pl.BlockSpec((64, 1024), lambda i: (0, 0)),
            pl.BlockSpec((1, 256), lambda i: (0, 0)),
            pl.BlockSpec((256, 512), lambda i: (0, 0)),
            pl.BlockSpec((1, 128), lambda i: (0, 0)),
            pl.BlockSpec((128, 128), lambda i: (0, 0)),
            pl.BlockSpec((1, 128), lambda i: (0, 0)),
        ],
        out_specs=pl.BlockSpec((bt, 128), lambda i: (i, 0)),
        compiler_params=pltpu.CompilerParams(
            dimension_semantics=("parallel",)),
    )(xf, w1d, b1_256, w2d, b2_128, wfcd, bfcd)

    return out[:B, :81]


# --------------------------- pure-JAX reference ----------------------------- #

def network_reference(x, params):
    w1, b1, w2, b2, fw, fb = params
    dn = ("NCHW", "OIHW", "NCHW")
    y = lax.conv_general_dilated(x, w1, (1, 1), ((1, 1), (1, 1)), dimension_numbers=dn)
    y = jnp.maximum(y + b1[None, :, None, None], 0.0)
    y = lax.reduce_window(y, -jnp.inf, lax.max, (1, 1, 2, 2), (1, 1, 2, 2), "VALID")
    y = lax.conv_general_dilated(y, w2, (1, 1), ((1, 1), (1, 1)), dimension_numbers=dn)
    y = jnp.maximum(y + b2[None, :, None, None], 0.0)
    y = lax.reduce_window(y, -jnp.inf, lax.max, (1, 1, 2, 2), (1, 1, 2, 2), "VALID")
    y = y.reshape(x.shape[0], -1)                     # NCHW flatten (c, h, w)
    return y @ fw.T + fb


# --------------------------------- main ------------------------------------ #

if __name__ == "__main__":
    key = jax.random.PRNGKey(0)
    kx, kx2, k1, k2, k3, k4, k5, k6 = jax.random.split(key, 8)

    # deterministic synthetic parameters (PyTorch shapes)
    w1 = jax.random.normal(k1, (16, 1, 3, 3), jnp.float32) * (1.0 / 3.0)
    b1 = jax.random.normal(k2, (16,), jnp.float32) * 0.1
    w2 = jax.random.normal(k3, (32, 16, 3, 3), jnp.float32) * (1.0 / 12.0)
    b2 = jax.random.normal(k4, (32,), jnp.float32) * 0.1
    fw = jax.random.normal(k5, (81, 128), jnp.float32) * (1.0 / jnp.sqrt(128.0))
    fb = jax.random.normal(k6, (81,), jnp.float32) * 0.1
    params = (w1, b1, w2, b2, fw, fb)

    # one-time host-side weight folding (outside the jitted forward)
    dense_params = prepare_dense_params(params)

    # input consistent with the module: flatten size 32*2*2 -> 8x8 single-channel
    x = jax.random.normal(kx, (2, 1, 8, 8), jnp.float32)

    out = jax.block_until_ready(network_forward(x, dense_params))
    ref = jax.block_until_ready(network_reference(x, params))
    assert out.shape == (2, 81), out.shape
    # bf16 matmul operands -> relaxed tolerance (XLA's default TPU dot/conv
    # precision also truncates toward bf16, so the reference is comparable).
    assert jnp.allclose(out, ref, atol=2e-2, rtol=2e-2), (
        float(jnp.max(jnp.abs(out - ref))))

    # second check: larger batch exercises the multi-step pipelined grid and
    # the padded-batch path (B=130 -> bt=64, grid=3).
    x2 = jax.random.normal(kx2, (130, 1, 8, 8), jnp.float32)
    out2 = jax.block_until_ready(network_forward(x2, dense_params))
    ref2 = jax.block_until_ready(network_reference(x2, params))
    assert out2.shape == (130, 81), out2.shape
    assert jnp.allclose(out2, ref2, atol=2e-2, rtol=2e-2), (
        float(jnp.max(jnp.abs(out2 - ref2))))

    print("KERNEL_OK")
</pallas_src>

<mosaic_0001>
module attributes {stable_mosaic.version = 11 : i64} {
  func.func @_fused_net_kernel(%arg0: i32, %arg1: memref<16x64xbf16, #tpu.memory_space<vmem>>, %arg2: memref<64x1024xbf16, #tpu.memory_space<vmem>>, %arg3: memref<1x256xf32, #tpu.memory_space<vmem>>, %arg4: memref<256x512xbf16, #tpu.memory_space<vmem>>, %arg5: memref<1x128xf32, #tpu.memory_space<vmem>>, %arg6: memref<128x128xbf16, #tpu.memory_space<vmem>>, %arg7: memref<1x128xf32, #tpu.memory_space<vmem>>, %arg8: memref<16x128xf32, #tpu.memory_space<vmem>>) attributes {dimension_semantics = [#tpu.dimension_semantics<parallel>], iteration_bounds = array<i64: 1>, scalar_prefetch = 0 : i64, scratch_operands = 0 : i64, tpu.core_type = #tpu.core_type<tc>, window_params = [{transform_indices = @transform_0, window_bounds = array<i64: 16, 64>}, {pipeline_mode = #tpu.pipeline_mode<synchronous>, transform_indices = @transform_1, window_bounds = array<i64: 64, 1024>}, {pipeline_mode = #tpu.pipeline_mode<synchronous>, transform_indices = @transform_2, window_bounds = array<i64: 1, 256>}, {pipeline_mode = #tpu.pipeline_mode<synchronous>, transform_indices = @transform_3, window_bounds = array<i64: 256, 512>}, {pipeline_mode = #tpu.pipeline_mode<synchronous>, transform_indices = @transform_4, window_bounds = array<i64: 1, 128>}, {pipeline_mode = #tpu.pipeline_mode<synchronous>, transform_indices = @transform_5, window_bounds = array<i64: 128, 128>}, {pipeline_mode = #tpu.pipeline_mode<synchronous>, transform_indices = @transform_6, window_bounds = array<i64: 1, 128>}, {transform_indices = @transform_7, window_bounds = array<i64: 16, 128>}]} {
    %c0 = arith.constant 0 : index
    %c0_0 = arith.constant 0 : index
    %0 = vector.load %arg1[%c0, %c0_0] : memref<16x64xbf16, #tpu.memory_space<vmem>>, vector<16x64xbf16>
    %c0_1 = arith.constant 0 : index
    %c0_2 = arith.constant 0 : index
    %1 = vector.load %arg2[%c0_1, %c0_2] : memref<64x1024xbf16, #tpu.memory_space<vmem>>, vector<64x1024xbf16>
    %cst = arith.constant dense<0.000000e+00> : vector<16x1024xf32>
    %2 = tpu.matmul %0, %1, %cst {dimension_numbers = #tpu.dot_dimension_numbers<[1], [0], [0], [1], [0, 0, 1, 1], [], []>} : vector<16x64xbf16>, vector<64x1024xbf16>, vector<16x1024xf32> -> vector<16x1024xf32>
    %3 = vector.extract_strided_slice %2 {offsets = [0, 0], sizes = [16, 256], strides = [1, 1]} : vector<16x1024xf32> to vector<16x256xf32>
    %4 = vector.extract_strided_slice %2 {offsets = [0, 256], sizes = [16, 256], strides = [1, 1]} : vector<16x1024xf32> to vector<16x256xf32>
    %5 = arith.maximumf %3, %4 : vector<16x256xf32>
    %6 = vector.extract_strided_slice %2 {offsets = [0, 512], sizes = [16, 256], strides = [1, 1]} : vector<16x1024xf32> to vector<16x256xf32>
    %7 = vector.extract_strided_slice %2 {offsets = [0, 768], sizes = [16, 256], strides = [1, 1]} : vector<16x1024xf32> to vector<16x256xf32>
    %8 = arith.maximumf %6, %7 : vector<16x256xf32>
    %9 = arith.maximumf %5, %8 : vector<16x256xf32>
    %c0_3 = arith.constant 0 : index
    %c0_4 = arith.constant 0 : index
    %10 = vector.load %arg3[%c0_3, %c0_4] : memref<1x256xf32, #tpu.memory_space<vmem>>, vector<1x256xf32>
    %11 = vector.broadcast %10 : vector<1x256xf32> to vector<16x256xf32>
    %12 = arith.addf %9, %11 : vector<16x256xf32>
    %cst_5 = arith.constant 0.000000e+00 : f32
    %13 = vector.broadcast %cst_5 : f32 to vector<16x256xf32>
    %14 = arith.maximumf %12, %13 : vector<16x256xf32>
    %15 = arith.truncf %14 : vector<16x256xf32> to vector<16x256xbf16>
    %c0_6 = arith.constant 0 : index
    %c0_7 = arith.constant 0 : index
    %16 = vector.load %arg4[%c0_6, %c0_7] : memref<256x512xbf16, #tpu.memory_space<vmem>>, vector<256x512xbf16>
    %cst_8 = arith.constant dense<0.000000e+00> : vector<16x512xf32>
    %17 = tpu.matmul %15, %16, %cst_8 {dimension_numbers = #tpu.dot_dimension_numbers<[1], [0], [0], [1], [0, 0, 1, 1], [], []>} : vector<16x256xbf16>, vector<256x512xbf16>, vector<16x512xf32> -> vector<16x512xf32>
    %18 = vector.extract_strided_slice %17 {offsets = [0, 0], sizes = [16, 128], strides = [1, 1]} : vector<16x512xf32> to vector<16x128xf32>
    %19 = vector.extract_strided_slice %17 {offsets = [0, 128], sizes = [16, 128], strides = [1, 1]} : vector<16x512xf32> to vector<16x128xf32>
    %20 = arith.maximumf %18, %19 : vector<16x128xf32>
    %21 = vector.extract_strided_slice %17 {offsets = [0, 256], sizes = [16, 128], strides = [1, 1]} : vector<16x512xf32> to vector<16x128xf32>
    %22 = vector.extract_strided_slice %17 {offsets = [0, 384], sizes = [16, 128], strides = [1, 1]} : vector<16x512xf32> to vector<16x128xf32>
    %23 = arith.maximumf %21, %22 : vector<16x128xf32>
    %24 = arith.maximumf %20, %23 : vector<16x128xf32>
    %c0_9 = arith.constant 0 : index
    %c0_10 = arith.constant 0 : index
    %25 = vector.load %arg5[%c0_9, %c0_10] : memref<1x128xf32, #tpu.memory_space<vmem>>, vector<1x128xf32>
    %26 = vector.broadcast %25 : vector<1x128xf32> to vector<16x128xf32>
    %27 = arith.addf %24, %26 : vector<16x128xf32>
    %cst_11 = arith.constant 0.000000e+00 : f32
    %28 = vector.broadcast %cst_11 : f32 to vector<16x128xf32>
    %29 = arith.maximumf %27, %28 : vector<16x128xf32>
    %30 = arith.truncf %29 : vector<16x128xf32> to vector<16x128xbf16>
    %c0_12 = arith.constant 0 : index
    %c0_13 = arith.constant 0 : index
    %31 = vector.load %arg6[%c0_12, %c0_13] : memref<128x128xbf16, #tpu.memory_space<vmem>>, vector<128x128xbf16>
    %cst_14 = arith.constant dense<0.000000e+00> : vector<16x128xf32>
    %32 = tpu.matmul %30, %31, %cst_14 {dimension_numbers = #tpu.dot_dimension_numbers<[1], [0], [0], [1], [0, 0, 1, 1], [], []>} : vector<16x128xbf16>, vector<128x128xbf16>, vector<16x128xf32> -> vector<16x128xf32>
    %c0_15 = arith.constant 0 : index
    %c0_16 = arith.constant 0 : index
    %33 = vector.load %arg7[%c0_15, %c0_16] : memref<1x128xf32, #tpu.memory_space<vmem>>, vector<1x128xf32>
    %34 = vector.broadcast %33 : vector<1x128xf32> to vector<16x128xf32>
    %35 = arith.addf %32, %34 : vector<16x128xf32>
    %c0_17 = arith.constant 0 : index
    %c0_18 = arith.constant 0 : index
    %36 = vector.load %arg8[%c0_17, %c0_18] : memref<16x128xf32, #tpu.memory_space<vmem>>, vector<16x128xf32>
    tpu.vector_store %arg8[%c0_17, %c0_18], %35 {strides = array<i32>} : memref<16x128xf32, #tpu.memory_space<vmem>>, vector<16x128xf32>,
    return
  }
  func.func @transform_0(%arg0: i32) -> (i32, i32) {
    %c0_i32 = arith.constant 0 : i32
    %c0_i32_0 = arith.constant 0 : i32
    return %arg0, %c0_i32 : i32, i32
  }
  func.func @transform_1(%arg0: i32) -> (i32, i32) {
    %c0_i32 = arith.constant 0 : i32
    %c0_i32_0 = arith.constant 0 : i32
    %c0_i32_1 = arith.constant 0 : i32
    return %c0_i32, %c0_i32_0 : i32, i32
  }
  func.func @transform_2(%arg0: i32) -> (i32, i32) {
    %c0_i32 = arith.constant 0 : i32
    %c0_i32_0 = arith.constant 0 : i32
    %c0_i32_1 = arith.constant 0 : i32
    return %c0_i32, %c0_i32_0 : i32, i32
  }
  func.func @transform_3(%arg0: i32) -> (i32, i32) {
    %c0_i32 = arith.constant 0 : i32
    %c0_i32_0 = arith.constant 0 : i32
    %c0_i32_1 = arith.constant 0 : i32
    return %c0_i32, %c0_i32_0 : i32, i32
  }
  func.func @transform_4(%arg0: i32) -> (i32, i32) {
    %c0_i32 = arith.constant 0 : i32
    %c0_i32_0 = arith.constant 0 : i32
    %c0_i32_1 = arith.constant 0 : i32
    return %c0_i32, %c0_i32_0 : i32, i32
  }
  func.func @transform_5(%arg0: i32) -> (i32, i32) {
    %c0_i32 = arith.constant 0 : i32
    %c0_i32_0 = arith.constant 0 : i32
    %c0_i32_1 = arith.constant 0 : i32
    return %c0_i32, %c0_i32_0 : i32, i32
  }
  func.func @transform_6(%arg0: i32) -> (i32, i32) {
    %c0_i32 = arith.constant 0 : i32
    %c0_i32_0 = arith.constant 0 : i32
    %c0_i32_1 = arith.constant 0 : i32
    return %c0_i32, %c0_i32_0 : i32, i32
  }
  func.func @transform_7(%arg0: i32) -> (i32, i32) {
    %c0_i32 = arith.constant 0 : i32
    %c0_i32_0 = arith.constant 0 : i32
    return %arg0, %c0_i32 : i32, i32
  }
}

</mosaic_0001>

<llo_original>
// kernel: network_forward.1
$region0: #{network_forward.1}
  #allocation0 [shape = 'u32[]', space=smem, size = 0x4, offset = 0x4, fixed_abs, tag = 'smem constant byte address 0x4 - core index']
  #allocation1 [shape = 'u32[144,128]{1,0:T(1,128)}', space=vmem, size = 0x12000, scoped, tag = 'internal scratch']
  %s0 = inlined_call_operand.vmem [shape: bf16[16,64], index: 0, kind: input, shape index: {}]
  %s1 = inlined_call_operand.hbm [shape: bf16[64,1024], index: 1, kind: input, shape index: {}]
  %s2 = inlined_call_operand.vmem [shape: f32[1,256], index: 2, kind: input, shape index: {}]
  %s3 = inlined_call_operand.hbm [shape: bf16[256,512], index: 3, kind: input, shape index: {}]
  %s4 = inlined_call_operand.vmem [shape: f32[1,128], index: 4, kind: input, shape index: {}]
  %s5 = inlined_call_operand.hbm [shape: bf16[128,128], index: 5, kind: input, shape index: {}]
  %s6 = inlined_call_operand.vmem [shape: f32[1,128], index: 6, kind: input, shape index: {}]
  %s7 = inlined_call_operand.vmem [shape: f32[16,128], index: 7, kind: output, shape index: {}]
  %s8 = sld [smem:[#allocation0]]
  $region50: #{network_forward.1} parent=0
    _
  %s10 = ssub.s32 1, %s8
  %s11 = scalar_select 0, %s10, %s8
  $region1: #{network_forward.1} parent=0
    #allocation2 [shape = 'u8[131072]{0}', space=vmem, size = 0x20000, scoped, tag = 'input window, operand 1, single buffered']
    #allocation3 [shape = 's32[1]{0}', space=sflag, size = 0x4, scoped, tag = 'scoped memory for network_forward.1']
    #allocation4 [shape = 'u8[262144]{0}', space=vmem, size = 0x40000, scoped, tag = 'input window, operand 3, single buffered']
    #allocation5 [shape = 's32[1]{0}', space=sflag, size = 0x4, scoped, tag = 'scoped memory for network_forward.1']
    #allocation6 [shape = 'u8[32768]{0}', space=vmem, size = 0x8000, scoped, tag = 'input window, operand 5, single buffered']
    %12 = vsyncpa [#allocation3], 0
    %13 = vsyncpa [#allocation5], 0
    // Predicated region
    $region2: #{network_forward.1} parent=1 // pred_check
      _
    $region3: #{network_forward.1} parent=1 // pred_check_branch
      %15 = sbr.rel (0) target = $region5
    $region4: #{network_forward.1} parent=1 // pred_region
      _
    $region5: #{network_forward.1} parent=1 // pred_fallthru
      _
    // Predicated region
    $region6: #{network_forward.1} parent=1 // pred_check
      _
    $region7: #{network_forward.1} parent=1 // pred_check_branch
      %17 = sbr.rel (0) target = $region9
    $region8: #{network_forward.1} parent=1 // pred_region
      %s19 = ssub.s32 4096, 4096
      %20 = vsyncadd [#allocation3], %s19
      %s21 = sshll.u32 [#allocation2], 4
      %s22 = int_to_ptr.vmem [resolvable:$true] %s21
      %27 = dma.hbm_to_vmem [thread:$0]  %s1, 4096, %s22, [#allocation3], 512, 512, 32
    $region9: #{network_forward.1} parent=1 // pred_fallthru
      _
    // Predicated region
    $region10: #{network_forward.1} parent=1 // pred_check
      _
    $region11: #{network_forward.1} parent=1 // pred_check_branch
      %29 = sbr.rel (0) target = $region13
    $region12: #{network_forward.1} parent=1 // pred_region
      _
    $region13: #{network_forward.1} parent=1 // pred_fallthru
      _
    // Predicated region
    $region14: #{network_forward.1} parent=1 // pred_check
      _
    $region15: #{network_forward.1} parent=1 // pred_check_branch
      %31 = sbr.rel (0) target = $region17
    $region16: #{network_forward.1} parent=1 // pred_region
      %s33 = ssub.s32 8192, 8192
      %34 = vsyncadd [#allocation5], %s33
      %s35 = sshll.u32 [#allocation4], 4
      %s36 = int_to_ptr.vmem [resolvable:$true] %s35
      %41 = dma.hbm_to_vmem [thread:$0]  %s3, 8192, %s36, [#allocation5], 256, 256, 16
    $region17: #{network_forward.1} parent=1 // pred_fallthru
      _
    // Predicated region
    $region18: #{network_forward.1} parent=1 // pred_check
      _
    $region19: #{network_forward.1} parent=1 // pred_check_branch
      %43 = sbr.rel (0) target = $region21
    $region20: #{network_forward.1} parent=1 // pred_region
      _
    $region21: #{network_forward.1} parent=1 // pred_fallthru
      _
    // Predicated region
    $region22: #{network_forward.1} parent=1 // pred_check
      _
    $region23: #{network_forward.1} parent=1 // pred_check_branch
      %45 = sbr.rel (0) target = $region25
    $region24: #{network_forward.1} parent=1 // pred_region
      %s47 = ssub.s32 1024, 1024
      %48 = vsyncadd [#allocation5], %s47
      %s49 = sshll.u32 [#allocation6], 4
      %s50 = int_to_ptr.vmem [resolvable:$true] %s49
      %55 = dma.hbm_to_vmem [thread:$0]  %s5, 1024, %s50, [#allocation5], 64, 64, 4
    $region25: #{network_forward.1} parent=1 // pred_fallthru
      _
    // Predicated region
    $region26: #{network_forward.1} parent=1 // pred_check
      _
    $region27: #{network_forward.1} parent=1 // pred_check_branch
      %57 = sbr.rel (0) target = $region29
    $region28: #{network_forward.1} parent=1 // pred_region
      _
    $region29: #{network_forward.1} parent=1 // pred_fallthru
      _
    // Predicated region
    $region30: #{network_forward.1} parent=1 // pred_check
      _
    $region31: #{network_forward.1} parent=1 // pred_check_branch
      %59 = sbr.rel (0) target = $region33
    $region32: #{network_forward.1} parent=1 // pred_region
      %60 = dma.done [#allocation3], 4096
    $region33: #{network_forward.1} parent=1 // pred_fallthru
      _
    // Predicated region
    $region34: #{network_forward.1} parent=1 // pred_check
      _
    $region35: #{network_forward.1} parent=1 // pred_check_branch
      %62 = sbr.rel (0) target = $region37
    $region36: #{network_forward.1} parent=1 // pred_region
      %63 = dma.done [#allocation5], 8192
    $region37: #{network_forward.1} parent=1 // pred_fallthru
      _
    // Predicated region
    $region38: #{network_forward.1} parent=1 // pred_check
      _
    $region39: #{network_forward.1} parent=1 // pred_check_branch
      %65 = sbr.rel (0) target = $region41
    $region40: #{network_forward.1} parent=1 // pred_region
      %66 = dma.done [#allocation5], 1024
    $region41: #{network_forward.1} parent=1 // pred_fallthru
      _
    %v68 = vld [vmem:[%s0] sm:$0xf]
    %v69 = vld [vmem:[%s0 + $0x4] sm:$0xf]
    %v70 = vld [vmem:[#allocation2] sm:$0xff]
    %v71 = vld [vmem:[#allocation2 + $0x8] sm:$0xff]
    %v72 = vld [vmem:[#allocation2 + $0x10] sm:$0xff]
    %v73 = vld [vmem:[#allocation2 + $0x18] sm:$0xff]
    %v74 = vld [vmem:[#allocation2 + $0x20] sm:$0xff]
    %v75 = vld [vmem:[#allocation2 + $0x28] sm:$0xff]
    %v76 = vld [vmem:[#allocation2 + $0x30] sm:$0xff]
    %v77 = vld [vmem:[#allocation2 + $0x38] sm:$0xff]
    %v78 = vld [vmem:[#allocation2 + $0x40] sm:$0xff]
    %v79 = vld [vmem:[#allocation2 + $0x48] sm:$0xff]
    %v80 = vld [vmem:[#allocation2 + $0x50] sm:$0xff]
    %v81 = vld [vmem:[#allocation2 + $0x58] sm:$0xff]
    %v82 = vld [vmem:[#allocation2 + $0x60] sm:$0xff]
    %v83 = vld [vmem:[#allocation2 + $0x68] sm:$0xff]
    %v84 = vld [vmem:[#allocation2 + $0x70] sm:$0xff]
    %v85 = vld [vmem:[#allocation2 + $0x78] sm:$0xff]
    %v86 = vld [vmem:[#allocation2 + $0x80] sm:$0xff]
    %v87 = vld [vmem:[#allocation2 + $0x88] sm:$0xff]
    %v88 = vld [vmem:[#allocation2 + $0x90] sm:$0xff]
    %v89 = vld [vmem:[#allocation2 + $0x98] sm:$0xff]
    %v90 = vld [vmem:[#allocation2 + $0xa0] sm:$0xff]
    %v91 = vld [vmem:[#allocation2 + $0xa8] sm:$0xff]
    %v92 = vld [vmem:[#allocation2 + $0xb0] sm:$0xff]
    %v93 = vld [vmem:[#allocation2 + $0xb8] sm:$0xff]
    %v94 = vld [vmem:[#allocation2 + $0xc0] sm:$0xff]
    %v95 = vld [vmem:[#allocation2 + $0xc8] sm:$0xff]
    %v96 = vld [vmem:[#allocation2 + $0xd0] sm:$0xff]
    %v97 = vld [vmem:[#allocation2 + $0xd8] sm:$0xff]
    %v98 = vld [vmem:[#allocation2 + $0xe0] sm:$0xff]
    %v99 = vld [vmem:[#allocation2 + $0xe8] sm:$0xff]
    %v100 = vld [vmem:[#allocation2 + $0xf0] sm:$0xff]
    %v101 = vld [vmem:[#allocation2 + $0xf8] sm:$0xff]
    %v104 = vunpack.c.l.b16 %v68
    %v105 = vunpack.c.l.b16 %v69
    %v106 = vpack.c.b16 %v105, %v104
    %v139 = vunpack.c.l.b16 %v70
    %v140 = vunpack.c.h.b16 %v70
    %v141 = vunpack.c.l.b16 %v71
    %v142 = vunpack.c.h.b16 %v71
    %v143 = vunpack.c.l.b16 %v72
    %v144 = vunpack.c.h.b16 %v72
    %v145 = vunpack.c.l.b16 %v73
    %v146 = vunpack.c.h.b16 %v73
    %v147 = vunpack.c.l.b16 %v74
    %v148 = vunpack.c.h.b16 %v74
    %v149 = vunpack.c.l.b16 %v75
    %v150 = vunpack.c.h.b16 %v75
    %v151 = vunpack.c.l.b16 %v76
    %v152 = vunpack.c.h.b16 %v76
    %v153 = vunpack.c.l.b16 %v77
    %v154 = vunpack.c.h.b16 %v77
    %v155 = vunpack.c.l.b16 %v78
    %v156 = vunpack.c.h.b16 %v78
    %v157 = vunpack.c.l.b16 %v79
    %v158 = vunpack.c.h.b16 %v79
    %v159 = vunpack.c.l.b16 %v80
    %v160 = vunpack.c.h.b16 %v80
    %v161 = vunpack.c.l.b16 %v81
    %v162 = vunpack.c.h.b16 %v81
    %v163 = vunpack.c.l.b16 %v82
    %v164 = vunpack.c.h.b16 %v82
    %v165 = vunpack.c.l.b16 %v83
    %v166 = vunpack.c.h.b16 %v83
    %v167 = vunpack.c.l.b16 %v84
    %v168 = vunpack.c.h.b16 %v84
    %v169 = vunpack.c.l.b16 %v85
    %v170 = vunpack.c.h.b16 %v85
    %v171 = vunpack.c.l.b16 %v86
    %v172 = vunpack.c.h.b16 %v86
    %v173 = vunpack.c.l.b16 %v87
    %v174 = vunpack.c.h.b16 %v87
    %v175 = vunpack.c.l.b16 %v88
    %v176 = vunpack.c.h.b16 %v88
    %v177 = vunpack.c.l.b16 %v89
    %v178 = vunpack.c.h.b16 %v89
    %v179 = vunpack.c.l.b16 %v90
    %v180 = vunpack.c.h.b16 %v90
    %v181 = vunpack.c.l.b16 %v91
    %v182 = vunpack.c.h.b16 %v91
    %v183 = vunpack.c.l.b16 %v92
    %v184 = vunpack.c.h.b16 %v92
    %v185 = vunpack.c.l.b16 %v93
    %v186 = vunpack.c.h.b16 %v93
    %v187 = vunpack.c.l.b16 %v94
    %v188 = vunpack.c.h.b16 %v94
    %v189 = vunpack.c.l.b16 %v95
    %v190 = vunpack.c.h.b16 %v95
    %v191 = vunpack.c.l.b16 %v96
    %v192 = vunpack.c.h.b16 %v96
    %v193 = vunpack.c.l.b16 %v97
    %v194 = vunpack.c.h.b16 %v97
    %v195 = vunpack.c.l.b16 %v98
    %v196 = vunpack.c.h.b16 %v98
    %v197 = vunpack.c.l.b16 %v99
    %v198 = vunpack.c.h.b16 %v99
    %v199 = vunpack.c.l.b16 %v100
    %v200 = vunpack.c.h.b16 %v100
    %v201 = vunpack.c.l.b16 %v101
    %v202 = vunpack.c.h.b16 %v101
    %v203 = vpack.c.b16 %v147, %v139
    %v204 = vpack.c.b16 %v148, %v140
    %v205 = vpack.c.b16 %v149, %v141
    %v206 = vpack.c.b16 %v150, %v142
    %v207 = vpack.c.b16 %v151, %v143
    %v208 = vpack.c.b16 %v152, %v144
    %v209 = vpack.c.b16 %v153, %v145
    %v210 = vpack.c.b16 %v154, %v146
    %v211 = vpack.c.b16 %v163, %v155
    %v212 = vpack.c.b16 %v164, %v156
    %v213 = vpack.c.b16 %v165, %v157
    %v214 = vpack.c.b16 %v166, %v158
    %v215 = vpack.c.b16 %v167, %v159
    %v216 = vpack.c.b16 %v168, %v160
    %v217 = vpack.c.b16 %v169, %v161
    %v218 = vpack.c.b16 %v170, %v162
    %v219 = vpack.c.b16 %v179, %v171
    %v220 = vpack.c.b16 %v180, %v172
    %v221 = vpack.c.b16 %v181, %v173
    %v222 = vpack.c.b16 %v182, %v174
    %v223 = vpack.c.b16 %v183, %v175
    %v224 = vpack.c.b16 %v184, %v176
    %v225 = vpack.c.b16 %v185, %v177
    %v226 = vpack.c.b16 %v186, %v178
    %v227 = vpack.c.b16 %v195, %v187
    %v228 = vpack.c.b16 %v196, %v188
    %v229 = vpack.c.b16 %v197, %v189
    %v230 = vpack.c.b16 %v198, %v190
    %v231 = vpack.c.b16 %v199, %v191
    %v232 = vpack.c.b16 %v200, %v192
    %v233 = vpack.c.b16 %v201, %v193
    %v234 = vpack.c.b16 %v202, %v194
    %vm267 = vcmask 523264
    %v269 = vsel %vm267, %v106, 0
    %271 = vmatprep.subr.bf16.mxu0 0
    %272 = vmatpush1.bf16.msra.mxu0 0
    %273 = vmatprep.subr.bf16.mxu0 0
    %274 = vmatpush1.bf16.msra.mxu0 0
    %275 = vmatprep.subr.bf16.mxu0 0
    %276 = vmatpush1.bf16.msra.mxu0 0
    %277 = vmatprep.subr.bf16.mxu0 0
    %278 = vmatpush1.bf16.msra.mxu0 0
    %279 = vmatprep.subr.bf16.mxu0 %v228
    %280 = vmatpush1.bf16.msra.mxu0 %v227
    %281 = vmatprep.subr.bf16.mxu0 %v220
    %282 = vmatpush1.bf16.msra.mxu0 %v219
    %283 = vmatprep.subr.bf16.mxu0 %v212
    %284 = vmatpush1.bf16.msra.mxu0 %v211
    %285 = vmatprep.subr.bf16.mxu0 %v204
    %286 = vmatpush1.bf16.msra.mxu0 %v203
    %287 = vmatprep.subr.bf16.mxu0 0
    %288 = vmatpush2.bf16.msra.mxu0 0
    %289 = vmatprep.subr.bf16.mxu0 0
    %290 = vmatpush2.bf16.msra.mxu0 0
    %291 = vmatprep.subr.bf16.mxu0 0
    %292 = vmatpush2.bf16.msra.mxu0 0
    %293 = vmatprep.subr.bf16.mxu0 0
    %294 = vmatpush2.bf16.msra.mxu0 0
    %295 = vmatprep.subr.bf16.mxu0 0
    %296 = vmatpush2.bf16.msra.mxu0 0
    %297 = vmatprep.subr.bf16.mxu0 0
    %298 = vmatpush2.bf16.msra.mxu0 0
    %299 = vmatprep.subr.bf16.mxu0 0
    %300 = vmatpush2.bf16.msra.mxu0 0
    %301 = vmatprep.subr.bf16.mxu0 0
    %302 = vmatpush2.bf16.msra.mxu0 0
    %303 = vmatprep.mubr.bf16.mxu0 0
    %304 = vmatmul.mubr.bf16.gmra.mxu0 %v269
    %v305 = vpop.f32.mrf.mxu0
    %v306 = vadd.f32 0.0, %v305
    %v307 = vpop.f32.mrf.mxu0
    %v308 = vadd.f32 0.0, %v307
    %v309 = vpop.f32.mrf.mxu0
    %v310 = vadd.f32 0.0, %v309
    %v311 = vpop.f32.mrf.mxu0
    %v312 = vadd.f32 0.0, %v311
    %313 = vdwg.mxu0
    %314 = vmatprep.subr.bf16.mxu0 0
    %315 = vmatpush1.bf16.msra.mxu0 0
    %316 = vmatprep.subr.bf16.mxu0 0
    %317 = vmatpush1.bf16.msra.mxu0 0
    %318 = vmatprep.subr.bf16.mxu0 0
    %319 = vmatpush1.bf16.msra.mxu0 0
    %320 = vmatprep.subr.bf16.mxu0 0
    %321 = vmatpush1.bf16.msra.mxu0 0
    %322 = vmatprep.subr.bf16.mxu0 %v230
    %323 = vmatpush1.bf16.msra.mxu0 %v229
    %324 = vmatprep.subr.bf16.mxu0 %v222
    %325 = vmatpush1.bf16.msra.mxu0 %v221
    %326 = vmatprep.subr.bf16.mxu0 %v214
    %327 = vmatpush1.bf16.msra.mxu0 %v213
    %328 = vmatprep.subr.bf16.mxu0 %v206
    %329 = vmatpush1.bf16.msra.mxu0 %v205
    %330 = vmatprep.subr.bf16.mxu0 0
    %331 = vmatpush2.bf16.msra.mxu0 0
    %332 = vmatprep.subr.bf16.mxu0 0
    %333 = vmatpush2.bf16.msra.mxu0 0
    %334 = vmatprep.subr.bf16.mxu0 0
    %335 = vmatpush2.bf16.msra.mxu0 0
    %336 = vmatprep.subr.bf16.mxu0 0
    %337 = vmatpush2.bf16.msra.mxu0 0
    %338 = vmatprep.subr.bf16.mxu0 0
    %339 = vmatpush2.bf16.msra.mxu0 0
    %340 = vmatprep.subr.bf16.mxu0 0
    %341 = vmatpush2.bf16.msra.mxu0 0
    %342 = vmatprep.subr.bf16.mxu0 0
    %343 = vmatpush2.bf16.msra.mxu0 0
    %344 = vmatprep.subr.bf16.mxu0 0
    %345 = vmatpush2.bf16.msra.mxu0 0
    %346 = vmatprep.mubr.bf16.mxu0 0
    %347 = vmatmul.mubr.bf16.gmra.mxu0 %v269
    %v348 = vpop.f32.mrf.mxu0
    %v349 = vadd.f32 0.0, %v348
    %v350 = vpop.f32.mrf.mxu0
    %v351 = vadd.f32 0.0, %v350
    %v352 = vpop.f32.mrf.mxu0
    %v353 = vadd.f32 0.0, %v352
    %v354 = vpop.f32.mrf.mxu0
    %v355 = vadd.f32 0.0, %v354
    %356 = vdwg.mxu0
    %357 = vmatprep.subr.bf16.mxu0 0
    %358 = vmatpush1.bf16.msra.mxu0 0
    %359 = vmatprep.subr.bf16.mxu0 0
    %360 = vmatpush1.bf16.msra.mxu0 0
    %361 = vmatprep.subr.bf16.mxu0 0
    %362 = vmatpush1.bf16.msra.mxu0 0
    %363 = vmatprep.subr.bf16.mxu0 0
    %364 = vmatpush1.bf16.msra.mxu0 0
    %365 = vmatprep.subr.bf16.mxu0 %v232
    %366 = vmatpush1.bf16.msra.mxu0 %v231
    %367 = vmatprep.subr.bf16.mxu0 %v224
    %368 = vmatpush1.bf16.msra.mxu0 %v223
    %369 = vmatprep.subr.bf16.mxu0 %v216
    %370 = vmatpush1.bf16.msra.mxu0 %v215
    %371 = vmatprep.subr.bf16.mxu0 %v208
    %372 = vmatpush1.bf16.msra.mxu0 %v207
    %373 = vmatprep.subr.bf16.mxu0 0
    %374 = vmatpush2.bf16.msra.mxu0 0
    %375 = vmatprep.subr.bf16.mxu0 0
    %376 = vmatpush2.bf16.msra.mxu0 0
    %377 = vmatprep.subr.bf16.mxu0 0
    %378 = vmatpush2.bf16.msra.mxu0 0
    %379 = vmatprep.subr.bf16.mxu0 0
    %380 = vmatpush2.bf16.msra.mxu0 0
    %381 = vmatprep.subr.bf16.mxu0 0
    %382 = vmatpush2.bf16.msra.mxu0 0
    %383 = vmatprep.subr.bf16.mxu0 0
    %384 = vmatpush2.bf16.msra.mxu0 0
    %385 = vmatprep.subr.bf16.mxu0 0
    %386 = vmatpush2.bf16.msra.mxu0 0
    %387 = vmatprep.subr.bf16.mxu0 0
    %388 = vmatpush2.bf16.msra.mxu0 0
    %389 = vmatprep.mubr.bf16.mxu0 0
    %390 = vmatmul.mubr.bf16.gmra.mxu0 %v269
    %v391 = vpop.f32.mrf.mxu0
    %v392 = vadd.f32 0.0, %v391
    %v393 = vpop.f32.mrf.mxu0
    %v394 = vadd.f32 0.0, %v393
    %v395 = vpop.f32.mrf.mxu0
    %v396 = vadd.f32 0.0, %v395
    %v397 = vpop.f32.mrf.mxu0
    %v398 = vadd.f32 0.0, %v397
    %399 = vdwg.mxu0
    %400 = vmatprep.subr.bf16.mxu0 0
    %401 = vmatpush1.bf16.msra.mxu0 0
    %402 = vmatprep.subr.bf16.mxu0 0
    %403 = vmatpush1.bf16.msra.mxu0 0
    %404 = vmatprep.subr.bf16.mxu0 0
    %405 = vmatpush1.bf16.msra.mxu0 0
    %406 = vmatprep.subr.bf16.mxu0 0
    %407 = vmatpush1.bf16.msra.mxu0 0
    %408 = vmatprep.subr.bf16.mxu0 %v234
    %409 = vmatpush1.bf16.msra.mxu0 %v233
    %410 = vmatprep.subr.bf16.mxu0 %v226
    %411 = vmatpush1.bf16.msra.mxu0 %v225
    %412 = vmatprep.subr.bf16.mxu0 %v218
    %413 = vmatpush1.bf16.msra.mxu0 %v217
    %414 = vmatprep.subr.bf16.mxu0 %v210
    %415 = vmatpush1.bf16.msra.mxu0 %v209
    %416 = vmatprep.subr.bf16.mxu0 0
    %417 = vmatpush2.bf16.msra.mxu0 0
    %418 = vmatprep.subr.bf16.mxu0 0
    %419 = vmatpush2.bf16.msra.mxu0 0
    %420 = vmatprep.subr.bf16.mxu0 0
    %421 = vmatpush2.bf16.msra.mxu0 0
    %422 = vmatprep.subr.bf16.mxu0 0
    %423 = vmatpush2.bf16.msra.mxu0 0
    %424 = vmatprep.subr.bf16.mxu0 0
    %425 = vmatpush2.bf16.msra.mxu0 0
    %426 = vmatprep.subr.bf16.mxu0 0
    %427 = vmatpush2.bf16.msra.mxu0 0
    %428 = vmatprep.subr.bf16.mxu0 0
    %429 = vmatpush2.bf16.msra.mxu0 0
    %430 = vmatprep.subr.bf16.mxu0 0
    %431 = vmatpush2.bf16.msra.mxu0 0
    %432 = vmatprep.mubr.bf16.mxu0 0
    %433 = vmatmul.mubr.bf16.gmra.mxu0 %v269
    %v434 = vpop.f32.mrf.mxu0
    %v435 = vadd.f32 0.0, %v434
    %v436 = vpop.f32.mrf.mxu0
    %v437 = vadd.f32 0.0, %v436
    %v438 = vpop.f32.mrf.mxu0
    %v439 = vadd.f32 0.0, %v438
    %v440 = vpop.f32.mrf.mxu0
    %v441 = vadd.f32 0.0, %v440
    %442 = vdwg.mxu0
    %v443 = vmax.f32 %v306, %v349
    %v444 = vmax.f32 %v308, %v351
    %v445 = vmax.f32 %v310, %v353
    %v446 = vmax.f32 %v312, %v355
    %v447 = vmax.f32 %v392, %v435
    %v448 = vmax.f32 %v394, %v437
    %v449 = vmax.f32 %v396, %v439
    %v450 = vmax.f32 %v398, %v441
    %v451 = vmax.f32 %v443, %v447
    %v452 = vmax.f32 %v444, %v448
    %v453 = vmax.f32 %v445, %v449
    %v454 = vmax.f32 %v446, %v450
    %v455 = vld [vmem:[%s2] sm:$0x3]
    %v457 = vlaneseq
    %v458 = vshrl.u32 %v457, 7
    %v459 = vsub.s32 0, %v458
    %v460 = vrot.slane %v455, %v459
    %v461 = vlaneseq
    %v462 = vshrl.u32 %v461, 7
    %v463 = vsub.s32 1, %v462
    %v464 = vrot.slane %v455, %v463
    %v467 = vadd.f32 %v451, %v460
    %v468 = vadd.f32 %v452, %v464
    %v469 = vadd.f32 %v453, %v460
    %v470 = vadd.f32 %v454, %v464
    %v471 = vmax.f32 %v467, 0.0
    %v472 = vmax.f32 %v468, 0.0
    %v473 = vmax.f32 %v469, 0.0
    %v474 = vmax.f32 %v470, 0.0
    %v475 = vpack.c.bf16 %v473, %v471
    %v476 = vpack.c.bf16 %v474, %v472
    %v477 = vld [vmem:[#allocation4] sm:$0xff]
    %v478 = vld [vmem:[#allocation4 + $0x8] sm:$0xff]
    %v479 = vld [vmem:[#allocation4 + $0x10] sm:$0xff]
    %v480 = vld [vmem:[#allocation4 + $0x18] sm:$0xff]
    %v481 = vld [vmem:[#allocation4 + $0x20] sm:$0xff]
    %v482 = vld [vmem:[#allocation4 + $0x28] sm:$0xff]
    %v483 = vld [vmem:[#allocation4 + $0x30] sm:$0xff]
    %v484 = vld [vmem:[#allocation4 + $0x38] sm:$0xff]
    %v485 = vld [vmem:[#allocation4 + $0x40] sm:$0xff]
    %v486 = vld [vmem:[#allocation4 + $0x48] sm:$0xff]
    %v487 = vld [vmem:[#allocation4 + $0x50] sm:$0xff]
    %v488 = vld [vmem:[#allocation4 + $0x58] sm:$0xff]
    %v489 = vld [vmem:[#allocation4 + $0x60] sm:$0xff]
    %v490 = vld [vmem:[#allocation4 + $0x68] sm:$0xff]
    %v491 = vld [vmem:[#allocation4 + $0x70] sm:$0xff]
    %v492 = vld [vmem:[#allocation4 + $0x78] sm:$0xff]
    %v493 = vld [vmem:[#allocation4 + $0x80] sm:$0xff]
    %v494 = vld [vmem:[#allocation4 + $0x88] sm:$0xff]
    %v495 = vld [vmem:[#allocation4 + $0x90] sm:$0xff]
    %v496 = vld [vmem:[#allocation4 + $0x98] sm:$0xff]
    %v497 = vld [vmem:[#allocation4 + $0xa0] sm:$0xff]
    %v498 = vld [vmem:[#allocation4 + $0xa8] sm:$0xff]
    %v499 = vld [vmem:[#allocation4 + $0xb0] sm:$0xff]
    %v500 = vld [vmem:[#allocation4 + $0xb8] sm:$0xff]
    %v501 = vld [vmem:[#allocation4 + $0xc0] sm:$0xff]
    %v502 = vld [vmem:[#allocation4 + $0xc8] sm:$0xff]
    %v503 = vld [vmem:[#allocation4 + $0xd0] sm:$0xff]
    %v504 = vld [vmem:[#allocation4 + $0xd8] sm:$0xff]
    %v505 = vld [vmem:[#allocation4 + $0xe0] sm:$0xff]
    %v506 = vld [vmem:[#allocation4 + $0xe8] sm:$0xff]
    %v507 = vld [vmem:[#allocation4 + $0xf0] sm:$0xff]
    %v508 = vld [vmem:[#allocation4 + $0xf8] sm:$0xff]
    %v509 = vld [vmem:[#allocation4 + $0x100] sm:$0xff]
    %v510 = vld [vmem:[#allocation4 + $0x108] sm:$0xff]
    %v511 = vld [vmem:[#allocation4 + $0x110] sm:$0xff]
    %v512 = vld [vmem:[#allocation4 + $0x118] sm:$0xff]
    %v513 = vld [vmem:[#allocation4 + $0x120] sm:$0xff]
    %v514 = vld [vmem:[#allocation4 + $0x128] sm:$0xff]
    %v515 = vld [vmem:[#allocation4 + $0x130] sm:$0xff]
    %v516 = vld [vmem:[#allocation4 + $0x138] sm:$0xff]
    %v517 = vld [vmem:[#allocation4 + $0x140] sm:$0xff]
    %v518 = vld [vmem:[#allocation4 + $0x148] sm:$0xff]
    %v519 = vld [vmem:[#allocation4 + $0x150] sm:$0xff]
    %v520 = vld [vmem:[#allocation4 + $0x158] sm:$0xff]
    %v521 = vld [vmem:[#allocation4 + $0x160] sm:$0xff]
    %v522 = vld [vmem:[#allocation4 + $0x168] sm:$0xff]
    %v523 = vld [vmem:[#allocation4 + $0x170] sm:$0xff]
    %v524 = vld [vmem:[#allocation4 + $0x178] sm:$0xff]
    %v525 = vld [vmem:[#allocation4 + $0x180] sm:$0xff]
    %v526 = vld [vmem:[#allocation4 + $0x188] sm:$0xff]
    %v527 = vld [vmem:[#allocation4 + $0x190] sm:$0xff]
    %v528 = vld [vmem:[#allocation4 + $0x198] sm:$0xff]
    %v529 = vld [vmem:[#allocation4 + $0x1a0] sm:$0xff]
    %v530 = vld [vmem:[#allocation4 + $0x1a8] sm:$0xff]
    %v531 = vld [vmem:[#allocation4 + $0x1b0] sm:$0xff]
    %v532 = vld [vmem:[#allocation4 + $0x1b8] sm:$0xff]
    %v533 = vld [vmem:[#allocation4 + $0x1c0] sm:$0xff]
    %v534 = vld [vmem:[#allocation4 + $0x1c8] sm:$0xff]
    %v535 = vld [vmem:[#allocation4 + $0x1d0] sm:$0xff]
    %v536 = vld [vmem:[#allocation4 + $0x1d8] sm:$0xff]
    %v537 = vld [vmem:[#allocation4 + $0x1e0] sm:$0xff]
    %v538 = vld [vmem:[#allocation4 + $0x1e8] sm:$0xff]
    %v539 = vld [vmem:[#allocation4 + $0x1f0] sm:$0xff]
    %v540 = vld [vmem:[#allocation4 + $0x1f8] sm:$0xff]
    %v605 = vunpack.c.l.b16 %v477
    %v606 = vunpack.c.h.b16 %v477
    %v607 = vunpack.c.l.b16 %v478
    %v608 = vunpack.c.h.b16 %v478
    %v609 = vunpack.c.l.b16 %v479
    %v610 = vunpack.c.h.b16 %v479
    %v611 = vunpack.c.l.b16 %v480
    %v612 = vunpack.c.h.b16 %v480
    %v613 = vunpack.c.l.b16 %v481
    %v614 = vunpack.c.h.b16 %v481
    %v615 = vunpack.c.l.b16 %v482
    %v616 = vunpack.c.h.b16 %v482
    %v617 = vunpack.c.l.b16 %v483
    %v618 = vunpack.c.h.b16 %v483
    %v619 = vunpack.c.l.b16 %v484
    %v620 = vunpack.c.h.b16 %v484
    %v621 = vunpack.c.l.b16 %v485
    %v622 = vunpack.c.h.b16 %v485
    %v623 = vunpack.c.l.b16 %v486
    %v624 = vunpack.c.h.b16 %v486
    %v625 = vunpack.c.l.b16 %v487
    %v626 = vunpack.c.h.b16 %v487
    %v627 = vunpack.c.l.b16 %v488
    %v628 = vunpack.c.h.b16 %v488
    %v629 = vunpack.c.l.b16 %v489
    %v630 = vunpack.c.h.b16 %v489
    %v631 = vunpack.c.l.b16 %v490
    %v632 = vunpack.c.h.b16 %v490
    %v633 = vunpack.c.l.b16 %v491
    %v634 = vunpack.c.h.b16 %v491
    %v635 = vunpack.c.l.b16 %v492
    %v636 = vunpack.c.h.b16 %v492
    %v637 = vunpack.c.l.b16 %v493
    %v638 = vunpack.c.h.b16 %v493
    %v639 = vunpack.c.l.b16 %v494
    %v640 = vunpack.c.h.b16 %v494
    %v641 = vunpack.c.l.b16 %v495
    %v642 = vunpack.c.h.b16 %v495
    %v643 = vunpack.c.l.b16 %v496
    %v644 = vunpack.c.h.b16 %v496
    %v645 = vunpack.c.l.b16 %v497
    %v646 = vunpack.c.h.b16 %v497
    %v647 = vunpack.c.l.b16 %v498
    %v648 = vunpack.c.h.b16 %v498
    %v649 = vunpack.c.l.b16 %v499
    %v650 = vunpack.c.h.b16 %v499
    %v651 = vunpack.c.l.b16 %v500
    %v652 = vunpack.c.h.b16 %v500
    %v653 = vunpack.c.l.b16 %v501
    %v654 = vunpack.c.h.b16 %v501
    %v655 = vunpack.c.l.b16 %v502
    %v656 = vunpack.c.h.b16 %v502
    %v657 = vunpack.c.l.b16 %v503
    %v658 = vunpack.c.h.b16 %v503
    %v659 = vunpack.c.l.b16 %v504
    %v660 = vunpack.c.h.b16 %v504
    %v661 = vunpack.c.l.b16 %v505
    %v662 = vunpack.c.h.b16 %v505
    %v663 = vunpack.c.l.b16 %v506
    %v664 = vunpack.c.h.b16 %v506
    %v665 = vunpack.c.l.b16 %v507
    %v666 = vunpack.c.h.b16 %v507
    %v667 = vunpack.c.l.b16 %v508
    %v668 = vunpack.c.h.b16 %v508
    %v669 = vunpack.c.l.b16 %v509
    %v670 = vunpack.c.h.b16 %v509
    %v671 = vunpack.c.l.b16 %v510
    %v672 = vunpack.c.h.b16 %v510
    %v673 = vunpack.c.l.b16 %v511
    %v674 = vunpack.c.h.b16 %v511
    %v675 = vunpack.c.l.b16 %v512
    %v676 = vunpack.c.h.b16 %v512
    %v677 = vunpack.c.l.b16 %v513
    %v678 = vunpack.c.h.b16 %v513
    %v679 = vunpack.c.l.b16 %v514
    %v680 = vunpack.c.h.b16 %v514
    %v681 = vunpack.c.l.b16 %v515
    %v682 = vunpack.c.h.b16 %v515
    %v683 = vunpack.c.l.b16 %v516
    %v684 = vunpack.c.h.b16 %v516
    %v685 = vunpack.c.l.b16 %v517
    %v686 = vunpack.c.h.b16 %v517
    %v687 = vunpack.c.l.b16 %v518
    %v688 = vunpack.c.h.b16 %v518
    %v689 = vunpack.c.l.b16 %v519
    %v690 = vunpack.c.h.b16 %v519
    %v691 = vunpack.c.l.b16 %v520
    %v692 = vunpack.c.h.b16 %v520
    %v693 = vunpack.c.l.b16 %v521
    %v694 = vunpack.c.h.b16 %v521
    %v695 = vunpack.c.l.b16 %v522
    %v696 = vunpack.c.h.b16 %v522
    %v697 = vunpack.c.l.b16 %v523
    %v698 = vunpack.c.h.b16 %v523
    %v699 = vunpack.c.l.b16 %v524
    %v700 = vunpack.c.h.b16 %v524
    %v701 = vunpack.c.l.b16 %v525
    %v702 = vunpack.c.h.b16 %v525
    %v703 = vunpack.c.l.b16 %v526
    %v704 = vunpack.c.h.b16 %v526
    %v705 = vunpack.c.l.b16 %v527
    %v706 = vunpack.c.h.b16 %v527
    %v707 = vunpack.c.l.b16 %v528
    %v708 = vunpack.c.h.b16 %v528
    %v709 = vunpack.c.l.b16 %v529
    %v710 = vunpack.c.h.b16 %v529
    %v711 = vunpack.c.l.b16 %v530
    %v712 = vunpack.c.h.b16 %v530
    %v713 = vunpack.c.l.b16 %v531
    %v714 = vunpack.c.h.b16 %v531
    %v715 = vunpack.c.l.b16 %v532
    %v716 = vunpack.c.h.b16 %v532
    %v717 = vunpack.c.l.b16 %v533
    %v718 = vunpack.c.h.b16 %v533
    %v719 = vunpack.c.l.b16 %v534
    %v720 = vunpack.c.h.b16 %v534
    %v721 = vunpack.c.l.b16 %v535
    %v722 = vunpack.c.h.b16 %v535
    %v723 = vunpack.c.l.b16 %v536
    %v724 = vunpack.c.h.b16 %v536
    %v725 = vunpack.c.l.b16 %v537
    %v726 = vunpack.c.h.b16 %v537
    %v727 = vunpack.c.l.b16 %v538
    %v728 = vunpack.c.h.b16 %v538
    %v729 = vunpack.c.l.b16 %v539
    %v730 = vunpack.c.h.b16 %v539
    %v731 = vunpack.c.l.b16 %v540
    %v732 = vunpack.c.h.b16 %v540
    %v733 = vpack.c.b16 %v609, %v605
    %v734 = vpack.c.b16 %v610, %v606
    %v735 = vpack.c.b16 %v611, %v607
    %v736 = vpack.c.b16 %v612, %v608
    %v737 = vpack.c.b16 %v617, %v613
    %v738 = vpack.c.b16 %v618, %v614
    %v739 = vpack.c.b16 %v619, %v615
    %v740 = vpack.c.b16 %v620, %v616
    %v741 = vpack.c.b16 %v625, %v621
    %v742 = vpack.c.b16 %v626, %v622
    %v743 = vpack.c.b16 %v627, %v623
    %v744 = vpack.c.b16 %v628, %v624
    %v745 = vpack.c.b16 %v633, %v629
    %v746 = vpack.c.b16 %v634, %v630
    %v747 = vpack.c.b16 %v635, %v631
    %v748 = vpack.c.b16 %v636, %v632
    %v749 = vpack.c.b16 %v641, %v637
    %v750 = vpack.c.b16 %v642, %v638
    %v751 = vpack.c.b16 %v643, %v639
    %v752 = vpack.c.b16 %v644, %v640
    %v753 = vpack.c.b16 %v649, %v645
    %v754 = vpack.c.b16 %v650, %v646
    %v755 = vpack.c.b16 %v651, %v647
    %v756 = vpack.c.b16 %v652, %v648
    %v757 = vpack.c.b16 %v657, %v653
    %v758 = vpack.c.b16 %v658, %v654
    %v759 = vpack.c.b16 %v659, %v655
    %v760 = vpack.c.b16 %v660, %v656
    %v761 = vpack.c.b16 %v665, %v661
    %v762 = vpack.c.b16 %v666, %v662
    %v763 = vpack.c.b16 %v667, %v663
    %v764 = vpack.c.b16 %v668, %v664
    %v765 = vpack.c.b16 %v673, %v669
    %v766 = vpack.c.b16 %v674, %v670
    %v767 = vpack.c.b16 %v675, %v671
    %v768 = vpack.c.b16 %v676, %v672
    %v769 = vpack.c.b16 %v681, %v677
    %v770 = vpack.c.b16 %v682, %v678
    %v771 = vpack.c.b16 %v683, %v679
    %v772 = vpack.c.b16 %v684, %v680
    %v773 = vpack.c.b16 %v689, %v685
    %v774 = vpack.c.b16 %v690, %v686
    %v775 = vpack.c.b16 %v691, %v687
    %v776 = vpack.c.b16 %v692, %v688
    %v777 = vpack.c.b16 %v697, %v693
    %v778 = vpack.c.b16 %v698, %v694
    %v779 = vpack.c.b16 %v699, %v695
    %v780 = vpack.c.b16 %v700, %v696
    %v781 = vpack.c.b16 %v705, %v701
    %v782 = vpack.c.b16 %v706, %v702
    %v783 = vpack.c.b16 %v707, %v703
    %v784 = vpack.c.b16 %v708, %v704
    %v785 = vpack.c.b16 %v713, %v709
    %v786 = vpack.c.b16 %v714, %v710
    %v787 = vpack.c.b16 %v715, %v711
    %v788 = vpack.c.b16 %v716, %v712
    %v789 = vpack.c.b16 %v721, %v717
    %v790 = vpack.c.b16 %v722, %v718
    %v791 = vpack.c.b16 %v723, %v719
    %v792 = vpack.c.b16 %v724, %v720
    %v793 = vpack.c.b16 %v729, %v725
    %v794 = vpack.c.b16 %v730, %v726
    %v795 = vpack.c.b16 %v731, %v727
    %v796 = vpack.c.b16 %v732, %v728
    %861 = vmatprep.subr.bf16.mxu0 %v762
    %862 = vmatpush1.bf16.msra.mxu0 %v761
    %863 = vmatprep.subr.bf16.mxu0 %v758
    %864 = vmatpush1.bf16.msra.mxu0 %v757
    %865 = vmatprep.subr.bf16.mxu0 %v754
    %866 = vmatpush1.bf16.msra.mxu0 %v753
    %867 = vmatprep.subr.bf16.mxu0 %v750
    %868 = vmatpush1.bf16.msra.mxu0 %v749
    %869 = vmatprep.subr.bf16.mxu0 %v746
    %870 = vmatpush1.bf16.msra.mxu0 %v745
    %871 = vmatprep.subr.bf16.mxu0 %v742
    %872 = vmatpush1.bf16.msra.mxu0 %v741
    %873 = vmatprep.subr.bf16.mxu0 %v738
    %874 = vmatpush1.bf16.msra.mxu0 %v737
    %875 = vmatprep.subr.bf16.mxu0 %v734
    %876 = vmatpush1.bf16.msra.mxu0 %v733
    %877 = vmatprep.subr.bf16.mxu0 %v794
    %878 = vmatpush2.bf16.msra.mxu0 %v793
    %879 = vmatprep.subr.bf16.mxu0 %v790
    %880 = vmatpush2.bf16.msra.mxu0 %v789
    %881 = vmatprep.subr.bf16.mxu0 %v786
    %882 = vmatpush2.bf16.msra.mxu0 %v785
    %883 = vmatprep.subr.bf16.mxu0 %v782
    %884 = vmatpush2.bf16.msra.mxu0 %v781
    %885 = vmatprep.subr.bf16.mxu0 %v778
    %886 = vmatpush2.bf16.msra.mxu0 %v777
    %887 = vmatprep.subr.bf16.mxu0 %v774
    %888 = vmatpush2.bf16.msra.mxu0 %v773
    %889 = vmatprep.subr.bf16.mxu0 %v770
    %890 = vmatpush2.bf16.msra.mxu0 %v769
    %891 = vmatprep.subr.bf16.mxu0 %v766
    %892 = vmatpush2.bf16.msra.mxu0 %v765
    %893 = vmatprep.mubr.bf16.mxu0 %v476
    %894 = vmatmul.mubr.bf16.gmra.mxu0 %v475
    %v895 = vpop.f32.mrf.mxu0
    %v896 = vadd.f32 0.0, %v895
    %v897 = vpop.f32.mrf.mxu0
    %v898 = vadd.f32 0.0, %v897
    %v899 = vpop.f32.mrf.mxu0
    %v900 = vadd.f32 0.0, %v899
    %v901 = vpop.f32.mrf.mxu0
    %v902 = vadd.f32 0.0, %v901
    %903 = vdwg.mxu0
    %904 = vmatprep.subr.bf16.mxu0 %v764
    %905 = vmatpush1.bf16.msra.mxu0 %v763
    %906 = vmatprep.subr.bf16.mxu0 %v760
    %907 = vmatpush1.bf16.msra.mxu0 %v759
    %908 = vmatprep.subr.bf16.mxu0 %v756
    %909 = vmatpush1.bf16.msra.mxu0 %v755
    %910 = vmatprep.subr.bf16.mxu0 %v752
    %911 = vmatpush1.bf16.msra.mxu0 %v751
    %912 = vmatprep.subr.bf16.mxu0 %v748
    %913 = vmatpush1.bf16.msra.mxu0 %v747
    %914 = vmatprep.subr.bf16.mxu0 %v744
    %915 = vmatpush1.bf16.msra.mxu0 %v743
    %916 = vmatprep.subr.bf16.mxu0 %v740
    %917 = vmatpush1.bf16.msra.mxu0 %v739
    %918 = vmatprep.subr.bf16.mxu0 %v736
    %919 = vmatpush1.bf16.msra.mxu0 %v735
    %920 = vmatprep.subr.bf16.mxu0 %v796
    %921 = vmatpush2.bf16.msra.mxu0 %v795
    %922 = vmatprep.subr.bf16.mxu0 %v792
    %923 = vmatpush2.bf16.msra.mxu0 %v791
    %924 = vmatprep.subr.bf16.mxu0 %v788
    %925 = vmatpush2.bf16.msra.mxu0 %v787
    %926 = vmatprep.subr.bf16.mxu0 %v784
    %927 = vmatpush2.bf16.msra.mxu0 %v783
    %928 = vmatprep.subr.bf16.mxu0 %v780
    %929 = vmatpush2.bf16.msra.mxu0 %v779
    %930 = vmatprep.subr.bf16.mxu0 %v776
    %931 = vmatpush2.bf16.msra.mxu0 %v775
    %932 = vmatprep.subr.bf16.mxu0 %v772
    %933 = vmatpush2.bf16.msra.mxu0 %v771
    %934 = vmatprep.subr.bf16.mxu0 %v768
    %935 = vmatpush2.bf16.msra.mxu0 %v767
    %936 = vmatprep.mubr.bf16.mxu0 %v476
    %937 = vmatmul.mubr.bf16.gmra.mxu0 %v475
    %v938 = vpop.f32.mrf.mxu0
    %v939 = vadd.f32 0.0, %v938
    %v940 = vpop.f32.mrf.mxu0
    %v941 = vadd.f32 0.0, %v940
    %v942 = vpop.f32.mrf.mxu0
    %v943 = vadd.f32 0.0, %v942
    %v944 = vpop.f32.mrf.mxu0
    %v945 = vadd.f32 0.0, %v944
    %946 = vdwg.mxu0
    %v947 = vmax.f32 %v896, %v898
    %v948 = vmax.f32 %v900, %v902
    %v949 = vmax.f32 %v939, %v941
    %v950 = vmax.f32 %v943, %v945
    %v951 = vmax.f32 %v947, %v949
    %v952 = vmax.f32 %v948, %v950
    %v953 = vld [vmem:[%s4] sm:$0x1]
    %v955 = vlaneseq
    %v956 = vshrl.u32 %v955, 7
    %v957 = vsub.s32 0, %v956
    %v958 = vrot.slane %v953, %v957
    %v960 = vadd.f32 %v951, %v958
    %v961 = vadd.f32 %v952, %v958
    %v962 = vmax.f32 %v960, 0.0
    %v963 = vmax.f32 %v961, 0.0
    %v964 = vpack.c.bf16 %v963, %v962
    %v965 = vld [vmem:[#allocation6] sm:$0xf]
    %v966 = vld [vmem:[#allocation6 + $0x4] sm:$0xf]
    %v967 = vld [vmem:[#allocation6 + $0x8] sm:$0xf]
    %v968 = vld [vmem:[#allocation6 + $0xc] sm:$0xf]
    %v969 = vld [vmem:[#allocation6 + $0x10] sm:$0xf]
    %v970 = vld [vmem:[#allocation6 + $0x14] sm:$0xf]
    %v971 = vld [vmem:[#allocation6 + $0x18] sm:$0xf]
    %v972 = vld [vmem:[#allocation6 + $0x1c] sm:$0xf]
    %v973 = vld [vmem:[#allocation6 + $0x20] sm:$0xf]
    %v974 = vld [vmem:[#allocation6 + $0x24] sm:$0xf]
    %v975 = vld [vmem:[#allocation6 + $0x28] sm:$0xf]
    %v976 = vld [vmem:[#allocation6 + $0x2c] sm:$0xf]
    %v977 = vld [vmem:[#allocation6 + $0x30] sm:$0xf]
    %v978 = vld [vmem:[#allocation6 + $0x34] sm:$0xf]
    %v979 = vld [vmem:[#allocation6 + $0x38] sm:$0xf]
    %v980 = vld [vmem:[#allocation6 + $0x3c] sm:$0xf]
    %v981 = vld [vmem:[%s6] sm:$0x1]
    %v983 = vlaneseq
    %v984 = vshrl.u32 %v983, 7
    %v985 = vsub.s32 0, %v984
    %v986 = vrot.slane %v981, %v985
    %v1004 = vunpack.c.l.b16 %v965
    %v1005 = vunpack.c.l.b16 %v966
    %v1006 = vunpack.c.l.b16 %v967
    %v1007 = vunpack.c.l.b16 %v968
    %v1008 = vunpack.c.l.b16 %v969
    %v1009 = vunpack.c.l.b16 %v970
    %v1010 = vunpack.c.l.b16 %v971
    %v1011 = vunpack.c.l.b16 %v972
    %v1012 = vunpack.c.l.b16 %v973
    %v1013 = vunpack.c.l.b16 %v974
    %v1014 = vunpack.c.l.b16 %v975
    %v1015 = vunpack.c.l.b16 %v976
    %v1016 = vunpack.c.l.b16 %v977
    %v1017 = vunpack.c.l.b16 %v978
    %v1018 = vunpack.c.l.b16 %v979
    %v1019 = vunpack.c.l.b16 %v980
    %v1020 = vpack.c.b16 %v1005, %v1004
    %v1021 = vpack.c.b16 %v1007, %v1006
    %v1022 = vpack.c.b16 %v1009, %v1008
    %v1023 = vpack.c.b16 %v1011, %v1010
    %v1024 = vpack.c.b16 %v1013, %v1012
    %v1025 = vpack.c.b16 %v1015, %v1014
    %v1026 = vpack.c.b16 %v1017, %v1016
    %v1027 = vpack.c.b16 %v1019, %v1018
    %1036 = vmatprep.subr.bf16.mxu0 0
    %1037 = vmatpush1.bf16.msra.mxu0 %v1027
    %1038 = vmatprep.subr.bf16.mxu0 0
    %1039 = vmatpush1.bf16.msra.mxu0 %v1026
    %1040 = vmatprep.subr.bf16.mxu0 0
    %1041 = vmatpush1.bf16.msra.mxu0 %v1025
    %1042 = vmatprep.subr.bf16.mxu0 0
    %1043 = vmatpush1.bf16.msra.mxu0 %v1024
    %1044 = vmatprep.subr.bf16.mxu0 0
    %1045 = vmatpush1.bf16.msra.mxu0 %v1023
    %1046 = vmatprep.subr.bf16.mxu0 0
    %1047 = vmatpush1.bf16.msra.mxu0 %v1022
    %1048 = vmatprep.subr.bf16.mxu0 0
    %1049 = vmatpush1.bf16.msra.mxu0 %v1021
    %1050 = vmatprep.subr.bf16.mxu0 0
    %1051 = vmatpush1.bf16.msra.mxu0 %v1020
    %1052 = vmatprep.subr.bf16.mxu0 0
    %1053 = vmatpush2.bf16.msra.mxu0 0
    %1054 = vmatprep.subr.bf16.mxu0 0
    %1055 = vmatpush2.bf16.msra.mxu0 0
    %1056 = vmatprep.subr.bf16.mxu0 0
    %1057 = vmatpush2.bf16.msra.mxu0 0
    %1058 = vmatprep.subr.bf16.mxu0 0
    %1059 = vmatpush2.bf16.msra.mxu0 0
    %1060 = vmatprep.subr.bf16.mxu0 0
    %1061 = vmatpush2.bf16.msra.mxu0 0
    %1062 = vmatprep.subr.bf16.mxu0 0
    %1063 = vmatpush2.bf16.msra.mxu0 0
    %1064 = vmatprep.subr.bf16.mxu0 0
    %1065 = vmatpush2.bf16.msra.mxu0 0
    %1066 = vmatprep.subr.bf16.mxu0 0
    %1067 = vmatpush2.bf16.msra.mxu0 0
    %1068 = vmatprep.mubr.bf16.mxu0 0
    %1069 = vmatmul.mubr.bf16.gmra.mxu0 %v964
    %v1070 = vpop.f32.mrf.mxu0
    %v1071 = vadd.f32 %v986, %v1070
    %v1072 = vpop.f32.mrf.mxu0
    %v1073 = vpop.f32.mrf.mxu0
    %v1074 = vadd.f32 %v986, %v1073
    %v1075 = vpop.f32.mrf.mxu0
    %1076 = vdwg.mxu0
    %1077 = vst [vmem:[%s7] sm:$0xff] %v1071
    %1078 = vst [vmem:[%s7 + $0x8] sm:$0xff] %v1074
    // Predicated region
    $region42: #{network_forward.1} parent=1 // pred_check
      _
    $region43: #{network_forward.1} parent=1 // pred_check_branch
      %1080 = sbr.rel (0) target = $region45
    $region44: #{network_forward.1} parent=1 // pred_region
      _
    $region45: #{network_forward.1} parent=1 // pred_fallthru
      _
    // Predicated region
    $region46: #{network_forward.1} parent=1 // pred_check
      _
    $region47: #{network_forward.1} parent=1 // pred_check_branch
      %1082 = sbr.rel (0) target = $region49
    $region48: #{network_forward.1} parent=1 // pred_region
      _
    $region49: #{network_forward.1} parent=1 // pred_fallthru
      _
    %1083 = vsyncpa [#allocation3], 1
    %1084 = vsyncpa [#allocation5], 1

</llo_original>
